<compile_context>
chip_gen: v5e
topology: v5e:2x2
jax: 0.10.0
libtpu: 0.0.40
codegen_flags: <defaults>
</compile_context>

<pallas_src>
import numpy as np
import jax
import jax.numpy as jnp
from jax.experimental import pallas as pl
from jax.experimental.pallas import tpu as pltpu


def _round_up(x, m):
    return ((x + m - 1) // m) * m


def _lap_pe_kernel(h_ref, lap_ref, wt_ref, b_ref, o_ref):
    # Eigenvector projection on the MXU in the native input dtype, f32
    # accumulation; fused residual add + bias; dropout is identity (eval).
    enc = jnp.dot(lap_ref[...], wt_ref[...],
                  preferred_element_type=jnp.float32)        # [TILE_N, nhid_eff] f32
    o_ref[...] = (h_ref[...].astype(jnp.float32) + enc + b_ref[...]).astype(o_ref.dtype)


def laplacian_positional_encoding(h, eigvecs, weight, bias, *,
                                  tile_n=None, out_dtype=None):
    """h: [N, nhid], eigvecs: [N, k], weight: [nhid, k] (PyTorch Linear layout),
    bias: [nhid]. Returns [N, nhid] in `out_dtype` (default: h.dtype)."""
    n, nhid = h.shape
    k = eigvecs.shape[1]
    out_dtype = jnp.dtype(out_dtype) if out_dtype is not None else jnp.dtype(h.dtype)

    h_bytes = jnp.dtype(h.dtype).itemsize
    o_bytes = out_dtype.itemsize
    l_bytes = jnp.dtype(eigvecs.dtype).itemsize

    # Lane handling: full-dim blocks are legal when nhid is not a multiple of
    # 128, but then the review asks for a lane-dense (padded) output; when nhid
    # is already a multiple of 128 we feed h / write out directly (no copies).
    lane_pad = (nhid % 128) != 0
    nhid_eff = _round_up(nhid, 128) if lane_pad else nhid

    # Sublane packing: sub-32-bit streamed operands (h, out, OR eigvecs) need a
    # row multiple of 16 (32 for 8-bit).
    min_bytes = min(h_bytes, o_bytes, l_bytes)
    row_mult = 8 if min_bytes >= 4 else (16 if min_bytes >= 2 else 32)

    # Generation-aware VMEM budget (v7x has only 64 MiB of physical VMEM).
    try:
        vmem_cap = int(pltpu.get_tpu_info().vmem_capacity_bytes)
    except Exception:
        vmem_cap = 128 << 20
    small_vmem = vmem_cap <= (80 << 20)            # v7x-like
    budget = (28 << 20) if small_vmem else (56 << 20)
    limit_cap = (40 << 20) if small_vmem else (64 << 20)

    def _vmem_need(t):
        streamed = 2 * t * (nhid_eff * (h_bytes + o_bytes) + k * l_bytes)   # dbl-buffered
        f32_tmp = 2 * t * nhid_eff * 4              # f32 MXU result + f32-cast h
        resident = 2 * (k * nhid_eff * l_bytes + nhid_eff * 4)
        return streamed + f32_tmp + resident

    n_ceil = _round_up(n, row_mult)
    if tile_n is None:
        # Bytes-based sizing: >= ~4 MiB of streamed (h + out) per grid step so
        # per-step overhead (~0.35 us) stays well under DMA time.
        target = 4 << 20
        tile_n = max(row_mult,
                     _round_up(target // max(1, nhid_eff * (h_bytes + o_bytes)),
                               row_mult))
        tile_n = min(tile_n, n_ceil)
        if small_vmem:
            # Keep >= ~4 grid steps so both v7x TensorCores get work on the
            # "parallel" row axis.
            tile_n = min(tile_n, max(row_mult, _round_up(pl.cdiv(n, 4), row_mult)))
    else:
        tile_n = min(_round_up(tile_n, row_mult), n_ceil)

    while tile_n > row_mult and _vmem_need(tile_n) > budget:
        tile_n = max(row_mult, _round_up(tile_n // 2, row_mult))

    vmem_limit = int(min(limit_cap, max(2 * _vmem_need(tile_n), 4 << 20)))

    # W^T in the eigvecs dtype (bf16 x bf16 -> f32 on the MXU at full rate);
    # bias kept in f32 for the accumulate/add.
    w_t = weight.T.astype(eigvecs.dtype)            # [k, nhid]
    b2 = bias.astype(jnp.float32).reshape(1, nhid)
    if lane_pad:
        pad = nhid_eff - nhid
        h_in = jnp.pad(h, ((0, 0), (0, pad)))
        w_t = jnp.pad(w_t, ((0, 0), (0, pad)))
        b2 = jnp.pad(b2, ((0, 0), (0, pad)))
    else:
        h_in = h                                     # no copies in the common case

    cost = pl.CostEstimate(
        flops=2 * n * nhid_eff * k + 2 * n * nhid_eff,
        transcendentals=0,
        bytes_accessed=(n * nhid_eff * (h_bytes + o_bytes)
                        + n * k * l_bytes
                        + k * nhid_eff * l_bytes
                        + nhid_eff * 4),
    )

    out = pl.pallas_call(
        _lap_pe_kernel,
        out_shape=jax.ShapeDtypeStruct((n, nhid_eff), out_dtype),
        grid=(pl.cdiv(n, tile_n),),                  # ragged last block masked by Pallas
        in_specs=[
            pl.BlockSpec((tile_n, nhid_eff), lambda i: (i, 0)),   # h         (streamed)
            pl.BlockSpec((tile_n, k),        lambda i: (i, 0)),   # eigvecs   (streamed)
            pl.BlockSpec((k, nhid_eff),      lambda i: (0, 0)),   # W^T       (resident)
            pl.BlockSpec((1, nhid_eff),      lambda i: (0, 0)),   # bias      (resident)
        ],
        out_specs=pl.BlockSpec((tile_n, nhid_eff), lambda i: (i, 0)),
        compiler_params=pltpu.CompilerParams(
            dimension_semantics=("parallel",),       # rows independent -> megacore split
            vmem_limit_bytes=vmem_limit,
        ),
        cost_estimate=cost,
    )(h_in, eigvecs, w_t, b2)

    return out[:, :nhid] if lane_pad else out


def _reference(h, eigvecs, weight, bias):
    """Pure-JAX reference mirroring the PyTorch forward (eval mode)."""
    return h + eigvecs @ weight.T + bias


if __name__ == "__main__":
    key = jax.random.PRNGKey(0)
    k_h, k_e, k_w, k_b = jax.random.split(key, 4)

    # Case 1: small module-consistent shapes, f32, nhid % 128 != 0 (lane-pad
    # path), explicit small tile to exercise a multi-tile row grid.
    N, K, NHID = 32, 4, 32
    h = jax.random.normal(k_h, (N, NHID), dtype=jnp.float32)
    eigvecs = jax.random.normal(k_e, (N, K), dtype=jnp.float32)
    bound = 1.0 / np.sqrt(K)
    weight = jax.random.uniform(k_w, (NHID, K), jnp.float32, -bound, bound)
    bias = jax.random.uniform(k_b, (NHID,), jnp.float32, -bound, bound)

    ref = _reference(h, eigvecs, weight, bias)
    out = laplacian_positional_encoding(h, eigvecs, weight, bias, tile_n=8)
    out = jax.block_until_ready(out)
    np.testing.assert_allclose(np.asarray(out), np.asarray(ref),
                               rtol=1e-5, atol=1e-5)

    # Case 2: ragged row count (N not a multiple of the row tile), nhid a
    # multiple of 128 (no pads / no slices at all), bf16 I/O, auto tile sizing.
    N2, NHID2 = 37, 128
    h2 = jax.random.normal(k_h, (N2, NHID2), dtype=jnp.float32)
    e2 = jax.random.normal(k_e, (N2, K), dtype=jnp.float32)
    w2 = jax.random.uniform(k_w, (NHID2, K), jnp.float32, -bound, bound)
    b2v = jax.random.uniform(k_b, (NHID2,), jnp.float32, -bound, bound)

    ref2 = _reference(h2, e2, w2, b2v)
    out2 = laplacian_positional_encoding(
        h2.astype(jnp.bfloat16), e2.astype(jnp.bfloat16), w2, b2v,
        out_dtype=jnp.bfloat16)
    out2 = jax.block_until_ready(out2)
    np.testing.assert_allclose(np.asarray(out2).astype(np.float32),
                               np.asarray(ref2), rtol=5e-2, atol=5e-2)

    print("KERNEL_OK")
</pallas_src>

<mosaic_0001>
module attributes {stable_mosaic.version = 11 : i64} {
  func.func @_lap_pe_kernel(%arg0: i32, %arg1: memref<8x128xf32, #tpu.memory_space<vmem>>, %arg2: memref<8x4xf32, #tpu.memory_space<vmem>>, %arg3: memref<4x128xf32, #tpu.memory_space<vmem>>, %arg4: memref<1x128xf32, #tpu.memory_space<vmem>>, %arg5: memref<8x128xf32, #tpu.memory_space<vmem>>) attributes {dimension_semantics = [#tpu.dimension_semantics<parallel>], iteration_bounds = array<i64: 4>, scalar_prefetch = 0 : i64, scratch_operands = 0 : i64, tpu.core_type = #tpu.core_type<tc>, window_params = [{transform_indices = @transform_0, window_bounds = array<i64: 8, 128>}, {transform_indices = @transform_1, window_bounds = array<i64: 8, 4>}, {pipeline_mode = #tpu.pipeline_mode<synchronous>, transform_indices = @transform_2, window_bounds = array<i64: 4, 128>}, {pipeline_mode = #tpu.pipeline_mode<synchronous>, transform_indices = @transform_3, window_bounds = array<i64: 1, 128>}, {transform_indices = @transform_4, window_bounds = array<i64: 8, 128>}]} {
    %c0 = arith.constant 0 : index
    %c0_0 = arith.constant 0 : index
    %0 = vector.load %arg2[%c0, %c0_0] : memref<8x4xf32, #tpu.memory_space<vmem>>, vector<8x4xf32>
    %c0_1 = arith.constant 0 : index
    %c0_2 = arith.constant 0 : index
    %1 = vector.load %arg3[%c0_1, %c0_2] : memref<4x128xf32, #tpu.memory_space<vmem>>, vector<4x128xf32>
    %cst = arith.constant dense<0.000000e+00> : vector<8x128xf32>
    %2 = tpu.matmul %0, %1, %cst {dimension_numbers = #tpu.dot_dimension_numbers<[1], [0], [0], [1], [0, 0, 1, 1], [], []>} : vector<8x4xf32>, vector<4x128xf32>, vector<8x128xf32> -> vector<8x128xf32>
    %c0_3 = arith.constant 0 : index
    %c0_4 = arith.constant 0 : index
    %3 = vector.load %arg1[%c0_3, %c0_4] : memref<8x128xf32, #tpu.memory_space<vmem>>, vector<8x128xf32>
    %4 = arith.addf %3, %2 : vector<8x128xf32>
    %c0_5 = arith.constant 0 : index
    %c0_6 = arith.constant 0 : index
    %5 = vector.load %arg4[%c0_5, %c0_6] : memref<1x128xf32, #tpu.memory_space<vmem>>, vector<1x128xf32>
    %6 = vector.broadcast %5 : vector<1x128xf32> to vector<8x128xf32>
    %7 = arith.addf %4, %6 : vector<8x128xf32>
    %c0_7 = arith.constant 0 : index
    %c0_8 = arith.constant 0 : index
    %8 = vector.load %arg5[%c0_7, %c0_8] : memref<8x128xf32, #tpu.memory_space<vmem>>, vector<8x128xf32>
    tpu.vector_store %arg5[%c0_7, %c0_8], %7 {strides = array<i32>} : memref<8x128xf32, #tpu.memory_space<vmem>>, vector<8x128xf32>,
    return
  }
  func.func @transform_0(%arg0: i32) -> (i32, i32) {
    %c0_i32 = arith.constant 0 : i32
    %c0_i32_0 = arith.constant 0 : i32
    return %arg0, %c0_i32 : i32, i32
  }
  func.func @transform_1(%arg0: i32) -> (i32, i32) {
    %c0_i32 = arith.constant 0 : i32
    %c0_i32_0 = arith.constant 0 : i32
    return %arg0, %c0_i32 : i32, i32
  }
  func.func @transform_2(%arg0: i32) -> (i32, i32) {
    %c0_i32 = arith.constant 0 : i32
    %c0_i32_0 = arith.constant 0 : i32
    %c0_i32_1 = arith.constant 0 : i32
    return %c0_i32, %c0_i32_0 : i32, i32
  }
  func.func @transform_3(%arg0: i32) -> (i32, i32) {
    %c0_i32 = arith.constant 0 : i32
    %c0_i32_0 = arith.constant 0 : i32
    %c0_i32_1 = arith.constant 0 : i32
    return %c0_i32, %c0_i32_0 : i32, i32
  }
  func.func @transform_4(%arg0: i32) -> (i32, i32) {
    %c0_i32 = arith.constant 0 : i32
    %c0_i32_0 = arith.constant 0 : i32
    return %arg0, %c0_i32 : i32, i32
  }
}

</mosaic_0001>

<llo_original>
// kernel: tpu_custom_call.1
$region0: #{tpu_custom_call.1}
  #allocation0 [shape = 'u32[]', space=smem, size = 0x4, offset = 0x4, fixed_abs, tag = 'smem constant byte address 0x4 - core index']
  #allocation1 [shape = 'u32[72,128]{1,0:T(1,128)}', space=vmem, size = 0x9000, scoped, tag = 'internal scratch']
  %s0 = inlined_call_operand.vmem [shape: f32[32,128], index: 0, kind: input, shape index: {}]
  %s1 = inlined_call_operand.vmem [shape: f32[32,4], index: 1, kind: input, shape index: {}]
  %s2 = inlined_call_operand.vmem [shape: f32[4,128], index: 2, kind: input, shape index: {}]
  %s3 = inlined_call_operand.vmem [shape: f32[1,128], index: 3, kind: input, shape index: {}]
  %s4 = inlined_call_operand.hbm [shape: f32[32,128], index: 4, kind: output, shape index: {}]
  %s5 = sld [smem:[#allocation0]]
  $region49: #{tpu_custom_call.1} parent=0
    _
  %s7 = ssub.s32 1, %s5
  %s8 = scalar_select 0, %s7, %s5
  $region1: #{tpu_custom_call.1} parent=0
    #allocation2 [shape = 'u8[8192]{0}', space=vmem, size = 0x2000, scoped, tag = 'output window, operand 0']
    #allocation3 [shape = 's32[2]{0}', space=sflag, size = 0x8, scoped, tag = 'scoped memory for tpu_custom_call.1']
    %9 = vsyncpa [#allocation3], 0
    %s10 = scalar_lea.sflag [#allocation3], 1
    %11 = vsyncpa %s10, 0
    loop: start=0, step=1, limit=6
    $region2: #{tpu_custom_call.1} parent=1 // loop_pre_header
      _
    $region3: #{tpu_custom_call.1} parent=1 // loop_header
      %s13 = sphi 0, %s17
      %p14 = scmp.ge.s32.totalorder %s13, 6
      %s23 = sphi 0, %s25
      %s26 = sphi 0, %s23
      %s27 = sphi 0, %s26
      %s43 = sphi 0, %s27
      %s49 = sphi 0, %s51
      %s52 = sphi 0, %s49
      %s53 = sphi 0, %s52
      %s69 = sphi 0, %s53
      %s73 = sphi 0, %s73
      %s75 = sphi 0, %s73
      %s76 = sphi 0, %s75
      %s90 = sphi 0, %s76
      %s94 = sphi 0, %s94
      %s96 = sphi 0, %s94
      %s97 = sphi 0, %s96
      %s111 = sphi 0, %s97
      %s117 = sphi 0, %s119
      %s120 = sphi 0, %s117
      %s121 = sphi 0, %s120
      %s137 = sphi 0, %s121
    $region4: #{tpu_custom_call.1} parent=1 // loop_header_branch
      %16 = sbr.rel (%p14) target = $region8
    $region5: #{tpu_custom_call.1} parent=1 // loop_body
      %s18 = ssub.s32 %s13, 1
      %s19 = ssub.s32 %s13, 2
      %s20 = sadd.s32 %s13, 1
      %s21 = ssub.s32 %s13, %s20
      %p22 = scmp.eq.s32.totalorder %s21, 0
      %s24 = sadd.s32 %s23, 1
      %s25 = scalar_select %p22, %s23, %s24
      %p28 = pneg %p22
      %p29 = scmp.eq.s32.totalorder %s13, 3
      %p30 = por %p28, %p29
      %p31 = scmp.ne.s32.totalorder %s23, %s26
      %p32 = scmp.eq.s32.totalorder %s13, 0
      %p33 = por %p31, %p32
      %p34 = scmp.ne.s32.totalorder %s23, %s26
      %p35 = scmp.eq.s32.totalorder %s18, 3
      %p36 = por %p34, %p35
      %p37 = scmp.ne.s32.totalorder %s26, %s27
      %p38 = scmp.eq.s32.totalorder %s18, 0
      %p39 = por %p37, %p38
      %p40 = scmp.ne.s32.totalorder %s26, %s27
      %p41 = scmp.eq.s32.totalorder %s19, 3
      %p42 = por %p40, %p41
      %p44 = scmp.ne.s32.totalorder %s27, %s43
      %p45 = scmp.eq.s32.totalorder %s19, 0
      %p46 = por %p44, %p45
      %s47 = ssub.s32 %s13, %s20
      %p48 = scmp.eq.s32.totalorder %s47, 0
      %s50 = sadd.s32 %s49, 1
      %s51 = scalar_select %p48, %s49, %s50
      %p54 = pneg %p48
      %p55 = scmp.eq.s32.totalorder %s13, 3
      %p56 = por %p54, %p55
      %p57 = scmp.ne.s32.totalorder %s49, %s52
      %p58 = scmp.eq.s32.totalorder %s13, 0
      %p59 = por %p57, %p58
      %p60 = scmp.ne.s32.totalorder %s49, %s52
      %p61 = scmp.eq.s32.totalorder %s18, 3
      %p62 = por %p60, %p61
      %p63 = scmp.ne.s32.totalorder %s52, %s53
      %p64 = scmp.eq.s32.totalorder %s18, 0
      %p65 = por %p63, %p64
      %p66 = scmp.ne.s32.totalorder %s52, %s53
      %p67 = scmp.eq.s32.totalorder %s19, 3
      %p68 = por %p66, %p67
      %p70 = scmp.ne.s32.totalorder %s53, %s69
      %p71 = scmp.eq.s32.totalorder %s19, 0
      %p72 = por %p70, %p71
      %s74 = sadd.s32 %s73, 1
      %p77 = scmp.eq.s32.totalorder %s13, 3
      %p78 = scmp.ne.s32.totalorder %s73, %s75
      %p79 = scmp.eq.s32.totalorder %s13, 0
      %p80 = por %p78, %p79
      %p81 = scmp.ne.s32.totalorder %s73, %s75
      %p82 = scmp.eq.s32.totalorder %s18, 3
      %p83 = por %p81, %p82
      %p84 = scmp.ne.s32.totalorder %s75, %s76
      %p85 = scmp.eq.s32.totalorder %s18, 0
      %p86 = por %p84, %p85
      %p87 = scmp.ne.s32.totalorder %s75, %s76
      %p88 = scmp.eq.s32.totalorder %s19, 3
      %p89 = por %p87, %p88
      %p91 = scmp.ne.s32.totalorder %s76, %s90
      %p92 = scmp.eq.s32.totalorder %s19, 0
      %p93 = por %p91, %p92
      %s95 = sadd.s32 %s94, 1
      %p98 = scmp.eq.s32.totalorder %s13, 3
      %p99 = scmp.ne.s32.totalorder %s94, %s96
      %p100 = scmp.eq.s32.totalorder %s13, 0
      %p101 = por %p99, %p100
      %p102 = scmp.ne.s32.totalorder %s94, %s96
      %p103 = scmp.eq.s32.totalorder %s18, 3
      %p104 = por %p102, %p103
      %p105 = scmp.ne.s32.totalorder %s96, %s97
      %p106 = scmp.eq.s32.totalorder %s18, 0
      %p107 = por %p105, %p106
      %p108 = scmp.ne.s32.totalorder %s96, %s97
      %p109 = scmp.eq.s32.totalorder %s19, 3
      %p110 = por %p108, %p109
      %p112 = scmp.ne.s32.totalorder %s97, %s111
      %p113 = scmp.eq.s32.totalorder %s19, 0
      %p114 = por %p112, %p113
      %s115 = ssub.s32 %s13, %s20
      %p116 = scmp.eq.s32.totalorder %s115, 0
      %s118 = sadd.s32 %s117, 1
      %s119 = scalar_select %p116, %s117, %s118
      %p122 = pneg %p116
      %p123 = scmp.eq.s32.totalorder %s13, 3
      %p124 = por %p122, %p123
      %p125 = scmp.ne.s32.totalorder %s117, %s120
      %p126 = scmp.eq.s32.totalorder %s13, 0
      %p127 = por %p125, %p126
      %p128 = scmp.ne.s32.totalorder %s117, %s120
      %p129 = scmp.eq.s32.totalorder %s18, 3
      %p130 = por %p128, %p129
      %p131 = scmp.ne.s32.totalorder %s120, %s121
      %p132 = scmp.eq.s32.totalorder %s18, 0
      %p133 = por %p131, %p132
      %p134 = scmp.ne.s32.totalorder %s120, %s121
      %p135 = scmp.eq.s32.totalorder %s19, 3
      %p136 = por %p134, %p135
      %p138 = scmp.ne.s32.totalorder %s121, %s137
      %p139 = scmp.eq.s32.totalorder %s19, 0
      %p140 = por %p138, %p139
      %p141 = scmp.le.s32.totalorder 1, %s13
      %p142 = scmp.lt.s32.totalorder %s13, 5
      %p143 = pnand %p141, %p142
      %p144 = pneg %p143
      // Predicated region
      $region9: #{tpu_custom_call.1} parent=5 // pred_check
        _
      $region10: #{tpu_custom_call.1} parent=5 // pred_check_branch
        %146 = sbr.rel (%p143) target = $region12
      $region11: #{tpu_custom_call.1} parent=5 // pred_region
        %s147 = ssub.s32 %s13, 1
        // Predicated region
        $region13: #{tpu_custom_call.1} parent=11 // pred_check
          %p148 = pneg %p86
        $region14: #{tpu_custom_call.1} parent=11 // pred_check_branch
          %150 = sbr.rel (%p148) target = $region16
        $region15: #{tpu_custom_call.1} parent=11 // pred_region
          _
        $region16: #{tpu_custom_call.1} parent=11 // pred_fallthru
          _
        // Predicated region
        $region17: #{tpu_custom_call.1} parent=11 // pred_check
          %p151 = pneg %p107
        $region18: #{tpu_custom_call.1} parent=11 // pred_check_branch
          %153 = sbr.rel (%p151) target = $region20
        $region19: #{tpu_custom_call.1} parent=11 // pred_region
          _
        $region20: #{tpu_custom_call.1} parent=11 // pred_fallthru
          _
      $region12: #{tpu_custom_call.1} parent=5 // pred_fallthru
        _
      %p154 = scmp.lt.s32.totalorder %s13, 4
      // Predicated region
      $region21: #{tpu_custom_call.1} parent=5 // pred_check
        %p155 = pneg %p154
      $region22: #{tpu_custom_call.1} parent=5 // pred_check_branch
        %157 = sbr.rel (%p155) target = $region24
      $region23: #{tpu_custom_call.1} parent=5 // pred_region
        // Predicated region
        $region25: #{tpu_custom_call.1} parent=23 // pred_check
          %p158 = pneg %p33
        $region26: #{tpu_custom_call.1} parent=23 // pred_check_branch
          %160 = sbr.rel (%p158) target = $region28
        $region27: #{tpu_custom_call.1} parent=23 // pred_region
          %p161 = scmp.lt.s32.totalorder %s13, 3
          %s162 = scalar_select %p161, %s13, 3
          %s163 = smul.addr %s162, 8
          %s164 = scalar_lea.vmem %s0, %s163
        $region28: #{tpu_custom_call.1} parent=23 // pred_fallthru
          _
        // Predicated region
        $region29: #{tpu_custom_call.1} parent=23 // pred_check
          %p165 = pneg %p59
        $region30: #{tpu_custom_call.1} parent=23 // pred_check_branch
          %167 = sbr.rel (%p165) target = $region32
        $region31: #{tpu_custom_call.1} parent=23 // pred_region
          %p168 = scmp.lt.s32.totalorder %s13, 3
          %s169 = scalar_select %p168, %s13, 3
          %s170 = smul.addr %s169, 8
          %s171 = scalar_lea.vmem %s1, %s170
        $region32: #{tpu_custom_call.1} parent=23 // pred_fallthru
          _
      $region24: #{tpu_custom_call.1} parent=5 // pred_fallthru
        _
      %p172 = scmp.le.s32.totalorder 1, %s13
      %p173 = scmp.lt.s32.totalorder %s13, 5
      %p174 = pnand %p172, %p173
      %p175 = pneg %p174
      // Predicated region
      $region33: #{tpu_custom_call.1} parent=5 // pred_check
        _
      $region34: #{tpu_custom_call.1} parent=5 // pred_check_branch
        %177 = sbr.rel (%p174) target = $region36
      $region35: #{tpu_custom_call.1} parent=5 // pred_region
        %s178 = ssub.s32 %s13, 1
        %p179 = scmp.lt.s32.totalorder %s18, 3
        %s180 = scalar_select %p179, %s18, 3
        %s181 = smul.addr %s180, 8
        %s182 = scalar_lea.vmem %s0, %s181
        %p183 = pneg %p39
        %p184 = pneg %p36
        %p185 = scmp.lt.s32.totalorder %s18, 3
        %s186 = scalar_select %p185, %s18, 3
        %s187 = smul.addr %s186, 8
        %s188 = scalar_lea.vmem %s1, %s187
        %p189 = pneg %p65
        %p190 = pneg %p62
        %p191 = pneg %p86
        %p192 = pneg %p83
        %p193 = pneg %p107
        %p194 = pneg %p104
        %p195 = pneg %p133
        %p196 = pneg %p130
        %s197 = sand.u32 %s120, 1
        %s198 = scalar_lea.sflag [#allocation3], %s197
        %s199 = sand.u32 %s120, 1
        %s200 = smul.addr %s199, 8
        %s201 = scalar_lea.vmem [#allocation2], %s200
        %p202 = scmp.lt.s32.totalorder %s18, 3
        %s203 = scalar_select %p202, %s18, 3
        %s204 = smul.addr %s203, 8
        %s205 = scalar_lea.vmem %s0, %s204
        %p206 = scmp.lt.s32.totalorder %s18, 3
        %s207 = scalar_select %p206, %s18, 3
        %s208 = smul.addr %s207, 8
        %s209 = scalar_lea.vmem %s1, %s208
        %v210 = vld [vmem:[%s209] sm:$0xff]
        %v211 = vld [vmem:[%s2] sm:$0xf]
        %vm212 = vcmask 31744
        %v214 = vsel %vm212, %v210, 0
        %vm216 = vcmask 1043456
        %v218 = vsel %vm216, %v211, 0
        %220 = vmatpush.msra.mxu0 0.0
        %221 = vmatpush.msra.mxu0 0.0
        %222 = vmatpush.msra.mxu0 0.0
        %223 = vmatpush.msra.mxu0 0.0
        %224 = vmatpush.msra.mxu0 0.0
        %225 = vmatpush.msra.mxu0 0.0
        %226 = vmatpush.msra.mxu0 0.0
        %227 = vmatpush.msra.mxu0 0.0
        %228 = vmatpush.msra.mxu0 0.0
        %229 = vmatpush.msra.mxu0 0.0
        %230 = vmatpush.msra.mxu0 0.0
        %231 = vmatpush.msra.mxu0 0.0
        %232 = vmatpush.msra.mxu0 0.0
        %233 = vmatpush.msra.mxu0 0.0
        %234 = vmatpush.msra.mxu0 0.0
        %235 = vmatpush.msra.mxu0 %v218
        %236 = vmatmul.f32.gmra.mxu0 %v214
        %v237 = vpop.f32.mrf.mxu0
        %v238 = vadd.f32 0.0, %v237
        %239 = vdwg.mxu0
        %v240 = vld [vmem:[%s205] sm:$0xff]
        %v241 = vadd.f32 %v240, %v238
        %v242 = vld [vmem:[%s3] sm:$0x1]
        %v244 = vperm.slane %v242, 0
        %v246 = vadd.f32 %v241, %v244
        %247 = vst [vmem:[%s201] sm:$0xff] %v246
        %s248 = sand.u32 %s120, 1
        %s249 = scalar_lea.sflag [#allocation3], %s248
        %s250 = sand.u32 %s120, 1
        %s251 = smul.addr %s250, 8
        %s252 = scalar_lea.vmem [#allocation2], %s251
        // Predicated region
        $region37: #{tpu_custom_call.1} parent=35 // pred_check
          %p253 = pneg %p130
        $region38: #{tpu_custom_call.1} parent=35 // pred_check_branch
          %255 = sbr.rel (%p253) target = $region40
        $region39: #{tpu_custom_call.1} parent=35 // pred_region
          %257 = vsyncadd %s249, 0
          %s258 = smul.addr %s18, 8
          %s259 = scalar_lea.hbm %s4, %s258
          %s261 = sshll.u32 %s252, 4
          %s262 = int_to_ptr.vmem [resolvable:$true] %s261
          %s263 = sshll.u32 %s259, 4
          %s264 = int_to_ptr.hbm [resolvable:$true] %s263
          %266 = dma.vmem_to_hbm [thread:$0]  %s262, 128, %s264, %s249
        $region40: #{tpu_custom_call.1} parent=35 // pred_fallthru
          _
      $region36: #{tpu_custom_call.1} parent=5 // pred_fallthru
        _
      %p267 = scmp.le.s32.totalorder 2, %s13
      // Predicated region
      $region41: #{tpu_custom_call.1} parent=5 // pred_check
        %p268 = pneg %p267
      $region42: #{tpu_custom_call.1} parent=5 // pred_check_branch
        %270 = sbr.rel (%p268) target = $region44
      $region43: #{tpu_custom_call.1} parent=5 // pred_region
        %s271 = ssub.s32 %s13, 2
        // Predicated region
        $region45: #{tpu_custom_call.1} parent=43 // pred_check
          %p272 = pneg %p136
        $region46: #{tpu_custom_call.1} parent=43 // pred_check_branch
          %274 = sbr.rel (%p272) target = $region48
        $region47: #{tpu_custom_call.1} parent=43 // pred_region
          %s275 = sand.u32 %s121, 1
          %s276 = scalar_lea.sflag [#allocation3], %s275
          %s277 = sand.u32 %s121, 1
          %s278 = smul.addr %s277, 8
          %s279 = scalar_lea.vmem [#allocation2], %s278
          %281 = dma.done %s276, 128
        $region48: #{tpu_custom_call.1} parent=43 // pred_fallthru
          _
      $region44: #{tpu_custom_call.1} parent=5 // pred_fallthru
        _
    $region6: #{tpu_custom_call.1} parent=1 // loop_footer
      %s17 = sadd.s32 1, %s13
    $region7: #{tpu_custom_call.1} parent=1 // loop_footer_branch
      %12 = sbr.rel target = $region3
    $region8: #{tpu_custom_call.1} parent=1 // loop_exit
      _
    %282 = vsyncpa [#allocation3], 1
    %s283 = scalar_lea.sflag [#allocation3], 1
    %284 = vsyncpa %s283, 1

</llo_original>
